<compile_context>
chip_gen: v6e
topology: v6e:2x2x1
jax: 0.10.0
libtpu: 0.0.40
codegen_flags: <defaults>
</compile_context>

<pallas_src>
import jax
import jax.numpy as jnp
from jax.experimental import pallas as pl
from jax.experimental.pallas import tpu as pltpu


# ----------------------------------------------------------------------------
# Plain-JAX glue: buffers / parameter setup (matches nn.Module.__init__)
# ----------------------------------------------------------------------------
def posemb_sincos_2d(h, w, dim, temperature: int = 10000, dtype=jnp.float32):
    y, x = jnp.meshgrid(jnp.arange(h), jnp.arange(w), indexing="ij")
    assert dim % 4 == 0, "feature dimension must be multiple of 4 for sincos emb"
    omega = jnp.arange(dim // 4) / (dim // 4 - 1)
    omega = 1.0 / (temperature ** omega)
    y = y.reshape(-1)[:, None] * omega[None, :]
    x = x.reshape(-1)[:, None] * omega[None, :]
    pe = jnp.concatenate((jnp.sin(x), jnp.cos(x), jnp.sin(y), jnp.cos(y)), axis=1)
    return pe.astype(dtype)


def init_animate_flow_params(global_image_size, clip_dim, emb_dim):
    H, W = global_image_size
    # zero_module(...) in the original __init__ -> projection heads are zeros.
    return {
        "wg": jnp.zeros((emb_dim, clip_dim), jnp.float32),   # global_projection_head.weight
        "bg": jnp.zeros((emb_dim,), jnp.float32),            # global_projection_head.bias
        "wl": jnp.zeros((emb_dim, clip_dim), jnp.float32),   # local_projection_head.weight
        "bl": jnp.zeros((emb_dim,), jnp.float32),            # local_projection_head.bias
        "pos_2d": posemb_sincos_2d(H, W, clip_dim).reshape(H, W, clip_dim),
    }


# ----------------------------------------------------------------------------
# Pallas kernel: fused (batched projection heads + sequence concat)
# ----------------------------------------------------------------------------
def _condition_kernel(ehs_ref, cls_ref, xc_ref, wgt_ref, bg_ref, wlt_ref,
                      bl_ref, out_ref):
    # ehs_ref : (bb, T, E)   encoder_hidden_states pass-through (f32)
    # cls_ref : (bb, C)      CLIP pooler_output (cls token), f32 (cast in-kernel)
    # xc_ref  : (bb, Pp, C)  [placeholder ; uv descriptors ; zero pad], f32
    # wgt/wlt : (C, E)       pre-transposed Linear weights (MXU dtype)
    # bg/bl   : (1, E)       Linear biases (f32)
    # out_ref : (bb, S, E)   S = T + 1 + P
    bb, T, E = ehs_ref.shape
    S = out_ref.shape[1]
    Pp = xc_ref.shape[1]
    C = xc_ref.shape[2]
    Pc = S - T                      # 1 + P : global slot + local rows
    mxu_dtype = wgt_ref.dtype

    # [0, T): encoder_hidden_states pass-through (one contiguous aligned store).
    out_ref[:, :T, :] = ehs_ref[...].astype(out_ref.dtype)

    # Local projection over the phase-padded cond input. Row 0 per batch is a
    # placeholder that lands in the global slot (fixed up below); rows >= Pc
    # are zero padding and are never stored. The reshapes are tile-exact
    # (Pp % 8 == 0) on f32 values, so no relayout happens.
    x = xc_ref[...].reshape(bb * Pp, C).astype(mxu_dtype)
    l = jnp.dot(x, wlt_ref[...], preferred_element_type=jnp.float32)
    l = l + bl_ref[...]                                    # f32 epilogue (VPU)
    l3 = l.reshape(bb, Pp, E)
    # Single contiguous store of the whole conditioning region, aligned at T.
    out_ref[:, T:, :] = l3[:, :Pc, :].astype(out_ref.dtype)

    # Global projection (cls token) -> fix up the single global-slot row.
    g = jnp.dot(cls_ref[...].astype(mxu_dtype), wgt_ref[...],
                preferred_element_type=jnp.float32)
    g = g + bg_ref[...]                                    # (bb, E) f32
    for b in range(bb):             # static unroll; bb masked 1-row stores
        out_ref[b:b + 1, T:T + 1, :] = g[b:b + 1].astype(out_ref.dtype)[None]


def prepare_condition_and_concat(encoder_hidden_states, cls_token, uv_descriptor,
                                 wg, bg, wl, bl, *,
                                 mxu_dtype=jnp.bfloat16,
                                 out_dtype=jnp.float32,
                                 batch_block=None):
    """[encoder_hidden_states, Linear_g(cls), Linear_l(uvd)] concat along seq.

    Weights wg/wl are PyTorch (out_features, in_features); they are transposed
    and cast to `mxu_dtype` once here. Activations stay f32 at the boundary and
    are cast to `mxu_dtype` inside the kernel (f32 accumulation). Pass
    mxu_dtype=jnp.float32 for exact reference numerics; pass out_dtype=bf16 if
    the downstream UNet cross-attention consumes bf16.
    """
    B, T, E = encoder_hidden_states.shape
    _, P, C = uv_descriptor.shape
    Pc = 1 + P                              # global slot + local rows
    Pp = ((Pc + 7) // 8) * 8                # pad to a sublane multiple
    S = T + Pc

    # --- batch block selection -------------------------------------------
    # v5e/v6e: one big step (amortizes ~0.35us/step, fills the MXU).
    # v7x    : >= 2 parallel steps so both TensorCores get work.
    if batch_block is None:
        bb = B
        try:
            nc = int(getattr(jax.devices()[0], "num_cores", 1) or 1)
        except Exception:  # pragma: no cover - device introspection best-effort
            nc = 1
        if nc > 1 and B % nc == 0:
            cand = B // nc
            if cand == B or cand % 8 == 0:  # keep the (bb, C) cls block legal
                bb = cand
    else:
        bb = batch_block
    assert B % bb == 0, "batch_block must divide B"
    assert bb == B or bb % 8 == 0, "batch_block must be B or a multiple of 8"
    n_steps = B // bb

    # --- boundary tensors (no activation casts here; cast in-kernel) ------
    ehs = encoder_hidden_states.astype(jnp.float32)
    cls2 = cls_token.reshape(B, C).astype(jnp.float32)
    # cond input: 1 placeholder row (global slot) + P uv rows + zero pad to Pp.
    x_cond = jnp.pad(uv_descriptor.astype(jnp.float32),
                     ((0, 0), (1, Pp - Pc), (0, 0)))        # (B, Pp, C)
    wgt = wg.T.astype(mxu_dtype)            # (C, E), pre-transposed, MXU dtype
    wlt = wl.T.astype(mxu_dtype)            # (C, E)
    bg2 = bg.reshape(1, E).astype(jnp.float32)
    bl2 = bl.reshape(1, E).astype(jnp.float32)

    # --- explicit VMEM budget ---------------------------------------------
    out_bytes = jnp.dtype(out_dtype).itemsize
    mxu_bytes = jnp.dtype(mxu_dtype).itemsize
    est = (2 * bb * S * E * out_bytes            # out block (double buffered)
           + 2 * bb * T * E * 4                  # ehs block
           + 2 * bb * Pp * C * 4                 # cond-input block
           + 2 * bb * C * 4                      # cls block
           + 2 * C * E * mxu_bytes + 2 * E * 4   # resident weights / biases
           + bb * Pp * E * 4 + bb * E * 4)       # f32 GEMM results
    vmem_limit = min(max(int(est * 1.5), 32 << 20), 64 << 20)

    def _run(single_buffer_params):
        def const_spec(shape):
            imap = lambda i: (0, 0)
            if single_buffer_params:
                return pl.BlockSpec(shape, imap, pipeline_mode=pl.Buffered(1))
            return pl.BlockSpec(shape, imap)

        in_specs = [
            pl.BlockSpec((bb, T, E), lambda i: (i, 0, 0)),      # ehs
            pl.BlockSpec((bb, C), lambda i: (i, 0)),            # cls token
            pl.BlockSpec((bb, Pp, C), lambda i: (i, 0, 0)),     # cond input
            const_spec((C, E)),                                 # Wg^T (resident)
            const_spec((1, E)),                                 # bg   (resident)
            const_spec((C, E)),                                 # Wl^T (resident)
            const_spec((1, E)),                                 # bl   (resident)
        ]
        out_spec = pl.BlockSpec((bb, S, E), lambda i: (i, 0, 0))
        return pl.pallas_call(
            _condition_kernel,
            out_shape=jax.ShapeDtypeStruct((B, S, E), out_dtype),
            grid=(n_steps,),
            in_specs=in_specs,
            out_specs=out_spec,
            compiler_params=pltpu.CompilerParams(
                dimension_semantics=("parallel",),
                vmem_limit_bytes=vmem_limit),
        )(ehs, cls2, x_cond, wgt, bg2, wlt, bl2)

    try:
        return _run(True)
    except Exception:
        # TODO(synk): pl.Buffered(1) single-buffer hint unavailable on this
        #             jax version -> fall back to default double buffering.
        return _run(False)


# ----------------------------------------------------------------------------
# AnimateFlow.forward (global_condition_type='cls_token')
# ----------------------------------------------------------------------------
def animate_flow_forward(params, noisy_latents, timesteps, encoder_hidden_states,
                         global_image, point_uv, clip_last_hidden, clip_pooler):
    # TODO(synk): CLIPVisionModel not translated; clip_last_hidden / clip_pooler
    #             stand in for visual_encoder(global_image).
    del global_image, clip_last_hidden  # patch embeddings unused for 'cls_token'

    # uv_descriptor = pos_2d[point_uv[:, :, 1], point_uv[:, :, 0]]
    # TODO(synk): data-dependent row gather kept in XLA (see header note).
    uv_descriptor = params["pos_2d"][point_uv[:, :, 1], point_uv[:, :, 0]]

    cond_hidden = prepare_condition_and_concat(
        encoder_hidden_states, clip_pooler, uv_descriptor,
        params["wg"], params["bg"], params["wl"], params["bl"])

    # TODO(synk): self.unet(noisy_latents, timesteps, cond_hidden).sample not
    #             translated (external diffusion UNet); returning cond_hidden.
    del noisy_latents, timesteps
    return cond_hidden


# pure-JAX f32 reference for the Pallas-covered portion
def _reference_condition(ehs, cls_token, uvd, wg, bg, wl, bl):
    g = cls_token @ wg.T + bg                      # (B, E)
    l = uvd @ wl.T + bl                            # (B, P, E)
    return jnp.concatenate([ehs, g[:, None, :], l], axis=1)


if __name__ == "__main__":
    key = jax.random.PRNGKey(0)
    ks = jax.random.split(key, 8)

    # small, forward-consistent shapes (lane-dense feature dims, T % 8 == 0)
    B, T, P = 2, 8, 8                 # batch, text-cond tokens, query points
    H, W = 16, 16                     # global_image_size
    clip_dim = 128                    # CLIP hidden dim (multiple of 4 and 128)
    emb_dim = 256                     # UNet cross-attention dim (multiple of 128)
    num_patches = 16                  # 4x4 ViT grid

    noisy_latents = jax.random.normal(ks[0], (B, 4, P, 2), jnp.float32)
    timesteps = jnp.array([10, 20], jnp.int32)
    encoder_hidden_states = jax.random.normal(ks[1], (B, T, emb_dim), jnp.float32)
    global_image = jax.random.normal(ks[2], (B, 3, H, W), jnp.float32)   # NCHW
    point_uv = jax.random.randint(ks[3], (B, P, 2), 0, min(H, W), jnp.int32)

    # deterministic stand-ins for the (untranslated) CLIP encoder outputs
    clip_last_hidden = jax.random.normal(ks[4], (B, 1 + num_patches, clip_dim),
                                         jnp.float32)
    clip_pooler = jax.random.normal(ks[5], (B, clip_dim), jnp.float32)

    params = init_animate_flow_params((H, W), clip_dim, emb_dim)

    # --- correctness check of the Pallas kernel with non-trivial weights ---
    wg_t = jax.random.normal(ks[6], (emb_dim, clip_dim), jnp.float32) * 0.05
    wl_t = jax.random.normal(ks[7], (emb_dim, clip_dim), jnp.float32) * 0.05
    bg_t = jnp.linspace(-0.1, 0.1, emb_dim, dtype=jnp.float32)
    bl_t = jnp.linspace(0.1, -0.1, emb_dim, dtype=jnp.float32)
    uvd = params["pos_2d"][point_uv[:, :, 1], point_uv[:, :, 0]]
    want = _reference_condition(encoder_hidden_states, clip_pooler, uvd,
                                wg_t, bg_t, wl_t, bl_t)

    # exact path (f32 MXU operands) against the f32 reference
    got_f32 = prepare_condition_and_concat(encoder_hidden_states, clip_pooler,
                                           uvd, wg_t, bg_t, wl_t, bl_t,
                                           mxu_dtype=jnp.float32)
    got_f32 = jax.block_until_ready(got_f32)
    assert got_f32.shape == (B, T + 1 + P, emb_dim)
    assert jnp.allclose(got_f32, want, atol=2e-4, rtol=2e-4), "f32 kernel mismatch"

    # fast path (bf16 MXU operands, f32 accumulation) against the f32 reference
    got_bf16 = prepare_condition_and_concat(encoder_hidden_states, clip_pooler,
                                            uvd, wg_t, bg_t, wl_t, bl_t,
                                            mxu_dtype=jnp.bfloat16)
    got_bf16 = jax.block_until_ready(got_bf16)
    assert jnp.allclose(got_bf16, want, atol=2e-2, rtol=2e-2), "bf16 kernel mismatch"

    # --- faithful forward (zero-initialized projection heads, per __init__) ---
    out = animate_flow_forward(params, noisy_latents, timesteps,
                               encoder_hidden_states, global_image, point_uv,
                               clip_last_hidden, clip_pooler)
    out = jax.block_until_ready(out)
    assert out.shape == (B, T + 1 + P, emb_dim)
    assert jnp.allclose(out[:, :T, :], encoder_hidden_states, atol=1e-6)
    assert jnp.all(out[:, T:, :] == 0.0)   # zero-initialized heads -> zero cond
    print("KERNEL_OK")
</pallas_src>

<mosaic_0001>
module attributes {stable_mosaic.version = 11 : i64} {
  func.func @_condition_kernel(%arg0: i32, %arg1: memref<2x8x256xf32, #tpu.memory_space<vmem>>, %arg2: memref<2x128xf32, #tpu.memory_space<vmem>>, %arg3: memref<2x16x128xf32, #tpu.memory_space<vmem>>, %arg4: memref<128x256xf32, #tpu.memory_space<vmem>>, %arg5: memref<1x256xf32, #tpu.memory_space<vmem>>, %arg6: memref<128x256xf32, #tpu.memory_space<vmem>>, %arg7: memref<1x256xf32, #tpu.memory_space<vmem>>, %arg8: memref<2x17x256xf32, #tpu.memory_space<vmem>>) attributes {dimension_semantics = [#tpu.dimension_semantics<parallel>], iteration_bounds = array<i64: 1>, scalar_prefetch = 0 : i64, scratch_operands = 0 : i64, tpu.core_type = #tpu.core_type<tc>, window_params = [{transform_indices = @transform_0, window_bounds = array<i64: 2, 8, 256>}, {transform_indices = @transform_1, window_bounds = array<i64: 2, 128>}, {transform_indices = @transform_2, window_bounds = array<i64: 2, 16, 128>}, {pipeline_mode = #tpu.pipeline_mode<synchronous>, transform_indices = @transform_3, window_bounds = array<i64: 128, 256>}, {pipeline_mode = #tpu.pipeline_mode<synchronous>, transform_indices = @transform_4, window_bounds = array<i64: 1, 256>}, {pipeline_mode = #tpu.pipeline_mode<synchronous>, transform_indices = @transform_5, window_bounds = array<i64: 128, 256>}, {pipeline_mode = #tpu.pipeline_mode<synchronous>, transform_indices = @transform_6, window_bounds = array<i64: 1, 256>}, {transform_indices = @transform_7, window_bounds = array<i64: 2, 17, 256>}]} {
    %c0 = arith.constant 0 : index
    %c0_0 = arith.constant 0 : index
    %c0_1 = arith.constant 0 : index
    %0 = vector.load %arg1[%c0, %c0_0, %c0_1] : memref<2x8x256xf32, #tpu.memory_space<vmem>>, vector<2x8x256xf32>
    %c0_2 = arith.constant 0 : index
    %c0_3 = arith.constant 0 : index
    %c0_4 = arith.constant 0 : index
    %1 = vector.load %arg8[%c0_2, %c0_3, %c0_4] : memref<2x17x256xf32, #tpu.memory_space<vmem>>, vector<2x8x256xf32>
    tpu.vector_store %arg8[%c0_2, %c0_3, %c0_4], %0 {strides = array<i32>} : memref<2x17x256xf32, #tpu.memory_space<vmem>>, vector<2x8x256xf32>,
    %c0_5 = arith.constant 0 : index
    %c0_6 = arith.constant 0 : index
    %c0_7 = arith.constant 0 : index
    %2 = vector.load %arg3[%c0_5, %c0_6, %c0_7] : memref<2x16x128xf32, #tpu.memory_space<vmem>>, vector<2x16x128xf32>
    %3 = vector.shape_cast %2 : vector<2x16x128xf32> to vector<32x128xf32>
    %c0_8 = arith.constant 0 : index
    %c0_9 = arith.constant 0 : index
    %4 = vector.load %arg6[%c0_8, %c0_9] : memref<128x256xf32, #tpu.memory_space<vmem>>, vector<128x256xf32>
    %cst = arith.constant dense<0.000000e+00> : vector<32x256xf32>
    %5 = tpu.matmul %3, %4, %cst {dimension_numbers = #tpu.dot_dimension_numbers<[1], [0], [0], [1], [0, 0, 1, 1], [], []>} : vector<32x128xf32>, vector<128x256xf32>, vector<32x256xf32> -> vector<32x256xf32>
    %c0_10 = arith.constant 0 : index
    %c0_11 = arith.constant 0 : index
    %6 = vector.load %arg7[%c0_10, %c0_11] : memref<1x256xf32, #tpu.memory_space<vmem>>, vector<1x256xf32>
    %7 = vector.broadcast %6 : vector<1x256xf32> to vector<32x256xf32>
    %8 = arith.addf %5, %7 : vector<32x256xf32>
    %9 = vector.shape_cast %8 : vector<32x256xf32> to vector<2x16x256xf32>
    %10 = vector.extract_strided_slice %9 {offsets = [0, 0, 0], sizes = [2, 9, 256], strides = [1, 1, 1]} : vector<2x16x256xf32> to vector<2x9x256xf32>
    %c0_12 = arith.constant 0 : index
    %c8 = arith.constant 8 : index
    %c0_13 = arith.constant 0 : index
    %11 = vector.load %arg8[%c0_12, %c8, %c0_13] : memref<2x17x256xf32, #tpu.memory_space<vmem>>, vector<2x9x256xf32>
    tpu.vector_store %arg8[%c0_12, %c8, %c0_13], %10 {strides = array<i32>} : memref<2x17x256xf32, #tpu.memory_space<vmem>>, vector<2x9x256xf32>,
    %c0_14 = arith.constant 0 : index
    %c0_15 = arith.constant 0 : index
    %12 = vector.load %arg2[%c0_14, %c0_15] : memref<2x128xf32, #tpu.memory_space<vmem>>, vector<2x128xf32>
    %c0_16 = arith.constant 0 : index
    %c0_17 = arith.constant 0 : index
    %13 = vector.load %arg4[%c0_16, %c0_17] : memref<128x256xf32, #tpu.memory_space<vmem>>, vector<128x256xf32>
    %cst_18 = arith.constant dense<0.000000e+00> : vector<2x256xf32>
    %14 = tpu.matmul %12, %13, %cst_18 {dimension_numbers = #tpu.dot_dimension_numbers<[1], [0], [0], [1], [0, 0, 1, 1], [], []>} : vector<2x128xf32>, vector<128x256xf32>, vector<2x256xf32> -> vector<2x256xf32>
    %c0_19 = arith.constant 0 : index
    %c0_20 = arith.constant 0 : index
    %15 = vector.load %arg5[%c0_19, %c0_20] : memref<1x256xf32, #tpu.memory_space<vmem>>, vector<1x256xf32>
    %16 = vector.broadcast %15 : vector<1x256xf32> to vector<2x256xf32>
    %17 = arith.addf %14, %16 : vector<2x256xf32>
    %18 = vector.extract_strided_slice %17 {offsets = [0, 0], sizes = [1, 256], strides = [1, 1]} : vector<2x256xf32> to vector<1x256xf32>
    %19 = vector.shape_cast %18 : vector<1x256xf32> to vector<1x1x256xf32>
    %c0_21 = arith.constant 0 : index
    %c8_22 = arith.constant 8 : index
    %c0_23 = arith.constant 0 : index
    %20 = vector.load %arg8[%c0_21, %c8_22, %c0_23] : memref<2x17x256xf32, #tpu.memory_space<vmem>>, vector<1x1x256xf32>
    tpu.vector_store %arg8[%c0_21, %c8_22, %c0_23], %19 {strides = array<i32>} : memref<2x17x256xf32, #tpu.memory_space<vmem>>, vector<1x1x256xf32>,
    %21 = vector.extract_strided_slice %17 {offsets = [1, 0], sizes = [1, 256], strides = [1, 1]} : vector<2x256xf32> to vector<1x256xf32>
    %22 = vector.shape_cast %21 : vector<1x256xf32> to vector<1x1x256xf32>
    %c1 = arith.constant 1 : index
    %c8_24 = arith.constant 8 : index
    %c0_25 = arith.constant 0 : index
    %23 = vector.load %arg8[%c1, %c8_24, %c0_25] : memref<2x17x256xf32, #tpu.memory_space<vmem>>, vector<1x1x256xf32>
    tpu.vector_store %arg8[%c1, %c8_24, %c0_25], %22 {strides = array<i32>} : memref<2x17x256xf32, #tpu.memory_space<vmem>>, vector<1x1x256xf32>,
    return
  }
  func.func @transform_0(%arg0: i32) -> (i32, i32, i32) {
    %c0_i32 = arith.constant 0 : i32
    %c0_i32_0 = arith.constant 0 : i32
    %c0_i32_1 = arith.constant 0 : i32
    return %arg0, %c0_i32, %c0_i32_0 : i32, i32, i32
  }
  func.func @transform_1(%arg0: i32) -> (i32, i32) {
    %c0_i32 = arith.constant 0 : i32
    %c0_i32_0 = arith.constant 0 : i32
    return %arg0, %c0_i32 : i32, i32
  }
  func.func @transform_2(%arg0: i32) -> (i32, i32, i32) {
    %c0_i32 = arith.constant 0 : i32
    %c0_i32_0 = arith.constant 0 : i32
    %c0_i32_1 = arith.constant 0 : i32
    return %arg0, %c0_i32, %c0_i32_0 : i32, i32, i32
  }
  func.func @transform_3(%arg0: i32) -> (i32, i32) {
    %c0_i32 = arith.constant 0 : i32
    %c0_i32_0 = arith.constant 0 : i32
    %c0_i32_1 = arith.constant 0 : i32
    return %c0_i32, %c0_i32_0 : i32, i32
  }
  func.func @transform_4(%arg0: i32) -> (i32, i32) {
    %c0_i32 = arith.constant 0 : i32
    %c0_i32_0 = arith.constant 0 : i32
    %c0_i32_1 = arith.constant 0 : i32
    return %c0_i32, %c0_i32_0 : i32, i32
  }
  func.func @transform_5(%arg0: i32) -> (i32, i32) {
    %c0_i32 = arith.constant 0 : i32
    %c0_i32_0 = arith.constant 0 : i32
    %c0_i32_1 = arith.constant 0 : i32
    return %c0_i32, %c0_i32_0 : i32, i32
  }
  func.func @transform_6(%arg0: i32) -> (i32, i32) {
    %c0_i32 = arith.constant 0 : i32
    %c0_i32_0 = arith.constant 0 : i32
    %c0_i32_1 = arith.constant 0 : i32
    return %c0_i32, %c0_i32_0 : i32, i32
  }
  func.func @transform_7(%arg0: i32) -> (i32, i32, i32) {
    %c0_i32 = arith.constant 0 : i32
    %c0_i32_0 = arith.constant 0 : i32
    %c0_i32_1 = arith.constant 0 : i32
    return %arg0, %c0_i32, %c0_i32_0 : i32, i32, i32
  }
}

module attributes {stable_mosaic.version = 11 : i64} {
  func.func @_condition_kernel(%arg0: i32, %arg1: memref<2x8x256xf32, #tpu.memory_space<vmem>>, %arg2: memref<2x128xf32, #tpu.memory_space<vmem>>, %arg3: memref<2x16x128xf32, #tpu.memory_space<vmem>>, %arg4: memref<128x256xf32, #tpu.memory_space<vmem>>, %arg5: memref<1x256xf32, #tpu.memory_space<vmem>>, %arg6: memref<128x256xf32, #tpu.memory_space<vmem>>, %arg7: memref<1x256xf32, #tpu.memory_space<vmem>>, %arg8: memref<2x17x256xf32, #tpu.memory_space<vmem>>) attributes {dimension_semantics = [#tpu.dimension_semantics<parallel>], iteration_bounds = array<i64: 1>, scalar_prefetch = 0 : i64, scratch_operands = 0 : i64, tpu.core_type = #tpu.core_type<tc>, window_params = [{transform_indices = @transform_0, window_bounds = array<i64: 2, 8, 256>}, {transform_indices = @transform_1, window_bounds = array<i64: 2, 128>}, {transform_indices = @transform_2, window_bounds = array<i64: 2, 16, 128>}, {pipeline_mode = #tpu.pipeline_mode<synchronous>, transform_indices = @transform_3, window_bounds = array<i64: 128, 256>}, {pipeline_mode = #tpu.pipeline_mode<synchronous>, transform_indices = @transform_4, window_bounds = array<i64: 1, 256>}, {pipeline_mode = #tpu.pipeline_mode<synchronous>, transform_indices = @transform_5, window_bounds = array<i64: 128, 256>}, {pipeline_mode = #tpu.pipeline_mode<synchronous>, transform_indices = @transform_6, window_bounds = array<i64: 1, 256>}, {transform_indices = @transform_7, window_bounds = array<i64: 2, 17, 256>}]} {
    %c0 = arith.constant 0 : index
    %c0_0 = arith.constant 0 : index
    %c0_1 = arith.constant 0 : index
    %0 = vector.load %arg1[%c0, %c0_0, %c0_1] : memref<2x8x256xf32, #tpu.memory_space<vmem>>, vector<2x8x256xf32>
    %c0_2 = arith.constant 0 : index
    %c0_3 = arith.constant 0 : index
    %c0_4 = arith.constant 0 : index
    %1 = vector.load %arg8[%c0_2, %c0_3, %c0_4] : memref<2x17x256xf32, #tpu.memory_space<vmem>>, vector<2x8x256xf32>
    tpu.vector_store %arg8[%c0_2, %c0_3, %c0_4], %0 {strides = array<i32>} : memref<2x17x256xf32, #tpu.memory_space<vmem>>, vector<2x8x256xf32>,
    %c0_5 = arith.constant 0 : index
    %c0_6 = arith.constant 0 : index
    %c0_7 = arith.constant 0 : index
    %2 = vector.load %arg3[%c0_5, %c0_6, %c0_7] : memref<2x16x128xf32, #tpu.memory_space<vmem>>, vector<2x16x128xf32>
    %3 = vector.shape_cast %2 : vector<2x16x128xf32> to vector<32x128xf32>
    %c0_8 = arith.constant 0 : index
    %c0_9 = arith.constant 0 : index
    %4 = vector.load %arg6[%c0_8, %c0_9] : memref<128x256xf32, #tpu.memory_space<vmem>>, vector<128x256xf32>
    %cst = arith.constant dense<0.000000e+00> : vector<32x256xf32>
    %5 = tpu.matmul %3, %4, %cst {dimension_numbers = #tpu.dot_dimension_numbers<[1], [0], [0], [1], [0, 0, 1, 1], [], []>} : vector<32x128xf32>, vector<128x256xf32>, vector<32x256xf32> -> vector<32x256xf32>
    %c0_10 = arith.constant 0 : index
    %c0_11 = arith.constant 0 : index
    %6 = vector.load %arg7[%c0_10, %c0_11] : memref<1x256xf32, #tpu.memory_space<vmem>>, vector<1x256xf32>
    %7 = vector.broadcast %6 : vector<1x256xf32> to vector<32x256xf32>
    %8 = arith.addf %5, %7 : vector<32x256xf32>
    %9 = vector.shape_cast %8 : vector<32x256xf32> to vector<2x16x256xf32>
    %10 = vector.extract_strided_slice %9 {offsets = [0, 0, 0], sizes = [2, 9, 256], strides = [1, 1, 1]} : vector<2x16x256xf32> to vector<2x9x256xf32>
    %c0_12 = arith.constant 0 : index
    %c8 = arith.constant 8 : index
    %c0_13 = arith.constant 0 : index
    %11 = vector.load %arg8[%c0_12, %c8, %c0_13] : memref<2x17x256xf32, #tpu.memory_space<vmem>>, vector<2x9x256xf32>
    tpu.vector_store %arg8[%c0_12, %c8, %c0_13], %10 {strides = array<i32>} : memref<2x17x256xf32, #tpu.memory_space<vmem>>, vector<2x9x256xf32>,
    %c0_14 = arith.constant 0 : index
    %c0_15 = arith.constant 0 : index
    %12 = vector.load %arg2[%c0_14, %c0_15] : memref<2x128xf32, #tpu.memory_space<vmem>>, vector<2x128xf32>
    %c0_16 = arith.constant 0 : index
    %c0_17 = arith.constant 0 : index
    %13 = vector.load %arg4[%c0_16, %c0_17] : memref<128x256xf32, #tpu.memory_space<vmem>>, vector<128x256xf32>
    %cst_18 = arith.constant dense<0.000000e+00> : vector<2x256xf32>
    %14 = tpu.matmul %12, %13, %cst_18 {dimension_numbers = #tpu.dot_dimension_numbers<[1], [0], [0], [1], [0, 0, 1, 1], [], []>} : vector<2x128xf32>, vector<128x256xf32>, vector<2x256xf32> -> vector<2x256xf32>
    %c0_19 = arith.constant 0 : index
    %c0_20 = arith.constant 0 : index
    %15 = vector.load %arg5[%c0_19, %c0_20] : memref<1x256xf32, #tpu.memory_space<vmem>>, vector<1x256xf32>
    %16 = vector.broadcast %15 : vector<1x256xf32> to vector<2x256xf32>
    %17 = arith.addf %14, %16 : vector<2x256xf32>
    %18 = vector.extract_strided_slice %17 {offsets = [0, 0], sizes = [1, 256], strides = [1, 1]} : vector<2x256xf32> to vector<1x256xf32>
    %19 = vector.shape_cast %18 : vector<1x256xf32> to vector<1x1x256xf32>
    %c0_21 = arith.constant 0 : index
    %c8_22 = arith.constant 8 : index
    %c0_23 = arith.constant 0 : index
    %20 = vector.load %arg8[%c0_21, %c8_22, %c0_23] : memref<2x17x256xf32, #tpu.memory_space<vmem>>, vector<1x1x256xf32>
    tpu.vector_store %arg8[%c0_21, %c8_22, %c0_23], %19 {strides = array<i32>} : memref<2x17x256xf32, #tpu.memory_space<vmem>>, vector<1x1x256xf32>,
    %21 = vector.extract_strided_slice %17 {offsets = [1, 0], sizes = [1, 256], strides = [1, 1]} : vector<2x256xf32> to vector<1x256xf32>
    %22 = vector.shape_cast %21 : vector<1x256xf32> to vector<1x1x256xf32>
    %c1 = arith.constant 1 : index
    %c8_24 = arith.constant 8 : index
    %c0_25 = arith.constant 0 : index
    %23 = vector.load %arg8[%c1, %c8_24, %c0_25] : memref<2x17x256xf32, #tpu.memory_space<vmem>>, vector<1x1x256xf32>
    tpu.vector_store %arg8[%c1, %c8_24, %c0_25], %22 {strides = array<i32>} : memref<2x17x256xf32, #tpu.memory_space<vmem>>, vector<1x1x256xf32>,
    return
  }
  func.func @transform_0(%arg0: i32) -> (i32, i32, i32) {
    %c0_i32 = arith.constant 0 : i32
    %c0_i32_0 = arith.constant 0 : i32
    %c0_i32_1 = arith.constant 0 : i32
    return %arg0, %c0_i32, %c0_i32_0 : i32, i32, i32
  }
  func.func @transform_1(%arg0: i32) -> (i32, i32) {
    %c0_i32 = arith.constant 0 : i32
    %c0_i32_0 = arith.constant 0 : i32
    return %arg0, %c0_i32 : i32, i32
  }
  func.func @transform_2(%arg0: i32) -> (i32, i32, i32) {
    %c0_i32 = arith.constant 0 : i32
    %c0_i32_0 = arith.constant 0 : i32
    %c0_i32_1 = arith.constant 0 : i32
    return %arg0, %c0_i32, %c0_i32_0 : i32, i32, i32
  }
  func.func @transform_3(%arg0: i32) -> (i32, i32) {
    %c0_i32 = arith.constant 0 : i32
    %c0_i32_0 = arith.constant 0 : i32
    %c0_i32_1 = arith.constant 0 : i32
    return %c0_i32, %c0_i32_0 : i32, i32
  }
  func.func @transform_4(%arg0: i32) -> (i32, i32) {
    %c0_i32 = arith.constant 0 : i32
    %c0_i32_0 = arith.constant 0 : i32
    %c0_i32_1 = arith.constant 0 : i32
    return %c0_i32, %c0_i32_0 : i32, i32
  }
  func.func @transform_5(%arg0: i32) -> (i32, i32) {
    %c0_i32 = arith.constant 0 : i32
    %c0_i32_0 = arith.constant 0 : i32
    %c0_i32_1 = arith.constant 0 : i32
    return %c0_i32, %c0_i32_0 : i32, i32
  }
  func.func @transform_6(%arg0: i32) -> (i32, i32) {
    %c0_i32 = arith.constant 0 : i32
    %c0_i32_0 = arith.constant 0 : i32
    %c0_i32_1 = arith.constant 0 : i32
    return %c0_i32, %c0_i32_0 : i32, i32
  }
  func.func @transform_7(%arg0: i32) -> (i32, i32, i32) {
    %c0_i32 = arith.constant 0 : i32
    %c0_i32_0 = arith.constant 0 : i32
    %c0_i32_1 = arith.constant 0 : i32
    return %arg0, %c0_i32, %c0_i32_0 : i32, i32, i32
  }
}

</mosaic_0001>

<llo_original>
// kernel: tpu_custom_call.1
$region0: #{tpu_custom_call.1}
  #allocation0 [shape = 'u32[]', space=smem, size = 0x4, offset = 0x4, fixed_abs, tag = 'smem constant byte address 0x4 - core index']
  #allocation1 [shape = 'u32[144,128]{1,0:T(1,128)}', space=vmem, size = 0x12000, scoped, tag = 'internal scratch']
  %s0 = inlined_call_operand.hbm [shape: f32[2,8,256], index: 0, kind: input, shape index: {}]
  %s1 = inlined_call_operand.hbm [shape: f32[2,128], index: 1, kind: input, shape index: {}]
  %s2 = inlined_call_operand.hbm [shape: f32[2,16,128], index: 2, kind: input, shape index: {}]
  %s3 = inlined_call_operand.hbm [shape: f32[128,256], index: 3, kind: input, shape index: {}]
  %s4 = inlined_call_operand.vmem [shape: f32[1,256], index: 4, kind: input, shape index: {}]
  %s5 = inlined_call_operand.hbm [shape: f32[128,256], index: 5, kind: input, shape index: {}]
  %s6 = inlined_call_operand.vmem [shape: f32[1,256], index: 6, kind: input, shape index: {}]
  %s7 = inlined_call_operand.vmem [shape: f32[2,17,256], index: 7, kind: output, shape index: {}]
  %s8 = sld [smem:[#allocation0]]
  $region58: #{tpu_custom_call.1} parent=0
    _
  %s10 = ssub.s32 1, %s8
  %s11 = scalar_select 0, %s10, %s8
  $region1: #{tpu_custom_call.1} parent=0
    #allocation2 [shape = 'u8[16384]{0}', space=vmem, size = 0x4000, scoped, tag = 'input window, operand 0, single buffered']
    #allocation3 [shape = 's32[1]{0}', space=sflag, size = 0x4, scoped, tag = 'scoped memory for tpu_custom_call.1']
    #allocation4 [shape = 'u8[1024]{0}', space=vmem, size = 0x400, scoped, tag = 'input window, operand 1, single buffered']
    #allocation5 [shape = 's32[1]{0}', space=sflag, size = 0x4, scoped, tag = 'scoped memory for tpu_custom_call.1']
    #allocation6 [shape = 'u8[16384]{0}', space=vmem, size = 0x4000, scoped, tag = 'input window, operand 2, single buffered']
    #allocation7 [shape = 'u8[131072]{0}', space=vmem, size = 0x20000, scoped, tag = 'input window, operand 3, single buffered']
    #allocation8 [shape = 's32[1]{0}', space=sflag, size = 0x4, scoped, tag = 'scoped memory for tpu_custom_call.1']
    #allocation9 [shape = 'u8[131072]{0}', space=vmem, size = 0x20000, scoped, tag = 'input window, operand 5, single buffered']
    %12 = vsyncpa [#allocation3], 0
    %13 = vsyncpa [#allocation5], 0
    %14 = vsyncpa [#allocation8], 0
    // Predicated region
    $region2: #{tpu_custom_call.1} parent=1 // pred_check
      _
    $region3: #{tpu_custom_call.1} parent=1 // pred_check_branch
      %16 = sbr.rel (0) target = $region5
    $region4: #{tpu_custom_call.1} parent=1 // pred_region
      %s18 = ssub.s32 512, 512
      %19 = vsyncadd [#allocation3], %s18
      %s20 = sshll.u32 [#allocation2], 4
      %s21 = int_to_ptr.vmem [resolvable:$true] %s20
      %26 = dma.hbm_to_vmem [thread:$0]  %s0, 512, %s21, [#allocation3], 256, 256, 16
    $region5: #{tpu_custom_call.1} parent=1 // pred_fallthru
      _
    // Predicated region
    $region6: #{tpu_custom_call.1} parent=1 // pred_check
      _
    $region7: #{tpu_custom_call.1} parent=1 // pred_check_branch
      %28 = sbr.rel (0) target = $region9
    $region8: #{tpu_custom_call.1} parent=1 // pred_region
      %s30 = ssub.s32 32, 32
      %31 = vsyncadd [#allocation5], %s30
      %s33 = sshll.u32 [#allocation4], 4
      %s34 = int_to_ptr.vmem [resolvable:$true] %s33
      %36 = dma.hbm_to_vmem [thread:$0]  %s1, 32, %s34, [#allocation5]
    $region9: #{tpu_custom_call.1} parent=1 // pred_fallthru
      _
    // Predicated region
    $region10: #{tpu_custom_call.1} parent=1 // pred_check
      _
    $region11: #{tpu_custom_call.1} parent=1 // pred_check_branch
      %38 = sbr.rel (0) target = $region13
    $region12: #{tpu_custom_call.1} parent=1 // pred_region
      %s40 = ssub.s32 512, 512
      %41 = vsyncadd [#allocation5], %s40
      %s42 = sshll.u32 [#allocation6], 4
      %s43 = int_to_ptr.vmem [resolvable:$true] %s42
      %48 = dma.hbm_to_vmem [thread:$0]  %s2, 512, %s43, [#allocation5], 128, 128, 8
    $region13: #{tpu_custom_call.1} parent=1 // pred_fallthru
      _
    // Predicated region
    $region14: #{tpu_custom_call.1} parent=1 // pred_check
      _
    $region15: #{tpu_custom_call.1} parent=1 // pred_check_branch
      %50 = sbr.rel (0) target = $region17
    $region16: #{tpu_custom_call.1} parent=1 // pred_region
      %s52 = ssub.s32 4096, 4096
      %53 = vsyncadd [#allocation8], %s52
      %s54 = sshll.u32 [#allocation7], 4
      %s55 = int_to_ptr.vmem [resolvable:$true] %s54
      %60 = dma.hbm_to_vmem [thread:$0]  %s3, 4096, %s55, [#allocation8], 256, 256, 16
    $region17: #{tpu_custom_call.1} parent=1 // pred_fallthru
      _
    // Predicated region
    $region18: #{tpu_custom_call.1} parent=1 // pred_check
      _
    $region19: #{tpu_custom_call.1} parent=1 // pred_check_branch
      %62 = sbr.rel (0) target = $region21
    $region20: #{tpu_custom_call.1} parent=1 // pred_region
      _
    $region21: #{tpu_custom_call.1} parent=1 // pred_fallthru
      _
    // Predicated region
    $region22: #{tpu_custom_call.1} parent=1 // pred_check
      _
    $region23: #{tpu_custom_call.1} parent=1 // pred_check_branch
      %64 = sbr.rel (0) target = $region25
    $region24: #{tpu_custom_call.1} parent=1 // pred_region
      %s66 = ssub.s32 4096, 4096
      %67 = vsyncadd [#allocation8], %s66
      %s68 = sshll.u32 [#allocation9], 4
      %s69 = int_to_ptr.vmem [resolvable:$true] %s68
      %74 = dma.hbm_to_vmem [thread:$0]  %s5, 4096, %s69, [#allocation8], 256, 256, 16
    $region25: #{tpu_custom_call.1} parent=1 // pred_fallthru
      _
    // Predicated region
    $region26: #{tpu_custom_call.1} parent=1 // pred_check
      _
    $region27: #{tpu_custom_call.1} parent=1 // pred_check_branch
      %76 = sbr.rel (0) target = $region29
    $region28: #{tpu_custom_call.1} parent=1 // pred_region
      _
    $region29: #{tpu_custom_call.1} parent=1 // pred_fallthru
      _
    // Predicated region
    $region30: #{tpu_custom_call.1} parent=1 // pred_check
      _
    $region31: #{tpu_custom_call.1} parent=1 // pred_check_branch
      %78 = sbr.rel (0) target = $region33
    $region32: #{tpu_custom_call.1} parent=1 // pred_region
      %79 = dma.done [#allocation3], 512
    $region33: #{tpu_custom_call.1} parent=1 // pred_fallthru
      _
    // Predicated region
    $region34: #{tpu_custom_call.1} parent=1 // pred_check
      _
    $region35: #{tpu_custom_call.1} parent=1 // pred_check_branch
      %81 = sbr.rel (0) target = $region37
    $region36: #{tpu_custom_call.1} parent=1 // pred_region
      %82 = dma.done [#allocation5], 32
    $region37: #{tpu_custom_call.1} parent=1 // pred_fallthru
      _
    // Predicated region
    $region38: #{tpu_custom_call.1} parent=1 // pred_check
      _
    $region39: #{tpu_custom_call.1} parent=1 // pred_check_branch
      %84 = sbr.rel (0) target = $region41
    $region40: #{tpu_custom_call.1} parent=1 // pred_region
      %85 = dma.done [#allocation5], 512
    $region41: #{tpu_custom_call.1} parent=1 // pred_fallthru
      _
    // Predicated region
    $region42: #{tpu_custom_call.1} parent=1 // pred_check
      _
    $region43: #{tpu_custom_call.1} parent=1 // pred_check_branch
      %87 = sbr.rel (0) target = $region45
    $region44: #{tpu_custom_call.1} parent=1 // pred_region
      %88 = dma.done [#allocation8], 4096
    $region45: #{tpu_custom_call.1} parent=1 // pred_fallthru
      _
    // Predicated region
    $region46: #{tpu_custom_call.1} parent=1 // pred_check
      _
    $region47: #{tpu_custom_call.1} parent=1 // pred_check_branch
      %90 = sbr.rel (0) target = $region49
    $region48: #{tpu_custom_call.1} parent=1 // pred_region
      %91 = dma.done [#allocation8], 4096
    $region49: #{tpu_custom_call.1} parent=1 // pred_fallthru
      _
    %v92 = vld [vmem:[#allocation2] sm:$0xff]
    %v93 = vld [vmem:[#allocation2 + $0x8] sm:$0xff]
    %v94 = vld [vmem:[#allocation2 + $0x10] sm:$0xff]
    %v95 = vld [vmem:[#allocation2 + $0x18] sm:$0xff]
    %96 = vst [vmem:[%s7] sm:$0xff] %v92
    %97 = vst [vmem:[%s7 + $0x8] sm:$0xff] %v93
    %98 = vst [vmem:[%s7 + $0x30] sm:$0xff] %v94
    %99 = vst [vmem:[%s7 + $0x38] sm:$0xff] %v95
    %v100 = vld [vmem:[#allocation6] sm:$0xff]
    %v101 = vld [vmem:[#allocation6 + $0x8] sm:$0xff]
    %v102 = vld [vmem:[#allocation6 + $0x10] sm:$0xff]
    %v103 = vld [vmem:[#allocation6 + $0x18] sm:$0xff]
    %v104 = vld [vmem:[#allocation9] sm:$0xff]
    %v105 = vld [vmem:[#allocation9 + $0x8] sm:$0xff]
    %v106 = vld [vmem:[#allocation9 + $0x10] sm:$0xff]
    %v107 = vld [vmem:[#allocation9 + $0x18] sm:$0xff]
    %v108 = vld [vmem:[#allocation9 + $0x20] sm:$0xff]
    %v109 = vld [vmem:[#allocation9 + $0x28] sm:$0xff]
    %v110 = vld [vmem:[#allocation9 + $0x30] sm:$0xff]
    %v111 = vld [vmem:[#allocation9 + $0x38] sm:$0xff]
    %v112 = vld [vmem:[#allocation9 + $0x40] sm:$0xff]
    %v113 = vld [vmem:[#allocation9 + $0x48] sm:$0xff]
    %v114 = vld [vmem:[#allocation9 + $0x50] sm:$0xff]
    %v115 = vld [vmem:[#allocation9 + $0x58] sm:$0xff]
    %v116 = vld [vmem:[#allocation9 + $0x60] sm:$0xff]
    %v117 = vld [vmem:[#allocation9 + $0x68] sm:$0xff]
    %v118 = vld [vmem:[#allocation9 + $0x70] sm:$0xff]
    %v119 = vld [vmem:[#allocation9 + $0x78] sm:$0xff]
    %v120 = vld [vmem:[#allocation9 + $0x80] sm:$0xff]
    %v121 = vld [vmem:[#allocation9 + $0x88] sm:$0xff]
    %v122 = vld [vmem:[#allocation9 + $0x90] sm:$0xff]
    %v123 = vld [vmem:[#allocation9 + $0x98] sm:$0xff]
    %v124 = vld [vmem:[#allocation9 + $0xa0] sm:$0xff]
    %v125 = vld [vmem:[#allocation9 + $0xa8] sm:$0xff]
    %v126 = vld [vmem:[#allocation9 + $0xb0] sm:$0xff]
    %v127 = vld [vmem:[#allocation9 + $0xb8] sm:$0xff]
    %v128 = vld [vmem:[#allocation9 + $0xc0] sm:$0xff]
    %v129 = vld [vmem:[#allocation9 + $0xc8] sm:$0xff]
    %v130 = vld [vmem:[#allocation9 + $0xd0] sm:$0xff]
    %v131 = vld [vmem:[#allocation9 + $0xd8] sm:$0xff]
    %v132 = vld [vmem:[#allocation9 + $0xe0] sm:$0xff]
    %v133 = vld [vmem:[#allocation9 + $0xe8] sm:$0xff]
    %v134 = vld [vmem:[#allocation9 + $0xf0] sm:$0xff]
    %v135 = vld [vmem:[#allocation9 + $0xf8] sm:$0xff]
    %v136 = vld [vmem:[%s6] sm:$0x3]
    %v138 = vlaneseq
    %v139 = vshrl.u32 %v138, 7
    %v140 = vsub.s32 0, %v139
    %v141 = vrot.slane %v136, %v140
    %v142 = vlaneseq
    %v143 = vshrl.u32 %v142, 7
    %v144 = vsub.s32 1, %v143
    %v145 = vrot.slane %v136, %v144
    %148 = vmatprep.subr.mxu0 %v135
    %149 = vmatpush1.msra.mxu0 %v134
    %150 = vmatprep.subr.mxu0 %v133
    %151 = vmatpush1.msra.mxu0 %v132
    %152 = vmatprep.subr.mxu0 %v131
    %153 = vmatpush1.msra.mxu0 %v130
    %154 = vmatprep.subr.mxu0 %v129
    %155 = vmatpush1.msra.mxu0 %v128
    %156 = vmatprep.subr.mxu0 %v127
    %157 = vmatpush1.msra.mxu0 %v126
    %158 = vmatprep.subr.mxu0 %v125
    %159 = vmatpush1.msra.mxu0 %v124
    %160 = vmatprep.subr.mxu0 %v123
    %161 = vmatpush1.msra.mxu0 %v122
    %162 = vmatprep.subr.mxu0 %v121
    %163 = vmatpush1.msra.mxu0 %v120
    %164 = vmatprep.subr.mxu0 %v119
    %165 = vmatpush1.msra.mxu0 %v118
    %166 = vmatprep.subr.mxu0 %v117
    %167 = vmatpush1.msra.mxu0 %v116
    %168 = vmatprep.subr.mxu0 %v115
    %169 = vmatpush1.msra.mxu0 %v114
    %170 = vmatprep.subr.mxu0 %v113
    %171 = vmatpush1.msra.mxu0 %v112
    %172 = vmatprep.subr.mxu0 %v111
    %173 = vmatpush1.msra.mxu0 %v110
    %174 = vmatprep.subr.mxu0 %v109
    %175 = vmatpush1.msra.mxu0 %v108
    %176 = vmatprep.subr.mxu0 %v107
    %177 = vmatpush1.msra.mxu0 %v106
    %178 = vmatprep.subr.mxu0 %v105
    %179 = vmatpush1.msra.mxu0 %v104
    %180 = vmatprep.subr.mxu0 0.0
    %181 = vmatpush2.msra.mxu0 0.0
    %182 = vmatprep.subr.mxu0 0.0
    %183 = vmatpush2.msra.mxu0 0.0
    %184 = vmatprep.subr.mxu0 0.0
    %185 = vmatpush2.msra.mxu0 0.0
    %186 = vmatprep.subr.mxu0 0.0
    %187 = vmatpush2.msra.mxu0 0.0
    %188 = vmatprep.subr.mxu0 0.0
    %189 = vmatpush2.msra.mxu0 0.0
    %190 = vmatprep.subr.mxu0 0.0
    %191 = vmatpush2.msra.mxu0 0.0
    %192 = vmatprep.subr.mxu0 0.0
    %193 = vmatpush2.msra.mxu0 0.0
    %194 = vmatprep.subr.mxu0 0.0
    %195 = vmatpush2.msra.mxu0 0.0
    %196 = vmatprep.subr.mxu0 0.0
    %197 = vmatpush2.msra.mxu0 0.0
    %198 = vmatprep.subr.mxu0 0.0
    %199 = vmatpush2.msra.mxu0 0.0
    %200 = vmatprep.subr.mxu0 0.0
    %201 = vmatpush2.msra.mxu0 0.0
    %202 = vmatprep.subr.mxu0 0.0
    %203 = vmatpush2.msra.mxu0 0.0
    %204 = vmatprep.subr.mxu0 0.0
    %205 = vmatpush2.msra.mxu0 0.0
    %206 = vmatprep.subr.mxu0 0.0
    %207 = vmatpush2.msra.mxu0 0.0
    %208 = vmatprep.subr.mxu0 0.0
    %209 = vmatpush2.msra.mxu0 0.0
    %210 = vmatprep.subr.mxu0 0.0
    %211 = vmatpush2.msra.mxu0 0.0
    %212 = vmatprep.mubr.f32.mxu0 0.0
    %213 = vmatmul.mubr.f32.gmra.mxu0 %v100
    %v214 = vpop.f32.mrf.mxu0
    %v215 = vadd.f32 %v141, %v214
    %v216 = vpop.f32.mrf.mxu0
    %v217 = vadd.f32 %v145, %v216
    %218 = vmatprep.mubr.f32.mxu0 0.0
    %219 = vmatmul.mubr.f32.gmra.mxu0 %v101
    %v220 = vpop.f32.mrf.mxu0
    %v221 = vadd.f32 %v141, %v220
    %v222 = vpop.f32.mrf.mxu0
    %v223 = vadd.f32 %v145, %v222
    %224 = vmatprep.mubr.f32.mxu0 0.0
    %225 = vmatmul.mubr.f32.gmra.mxu0 %v102
    %v226 = vpop.f32.mrf.mxu0
    %v227 = vadd.f32 %v141, %v226
    %v228 = vpop.f32.mrf.mxu0
    %v229 = vadd.f32 %v145, %v228
    %230 = vmatprep.mubr.f32.mxu0 0.0
    %231 = vmatmul.mubr.f32.gmra.mxu0 %v103
    %v232 = vpop.f32.mrf.mxu0
    %v233 = vadd.f32 %v141, %v232
    %v234 = vpop.f32.mrf.mxu0
    %v235 = vadd.f32 %v145, %v234
    %236 = vdwg.mxu0
    %237 = vst [vmem:[%s7 + $0x10] sm:$0xff] %v215
    %238 = vst [vmem:[%s7 + $0x18] sm:$0xff] %v217
    %239 = vst [vmem:[%s7 + $0x20] sm:$0x1] %v221
    %240 = vst [vmem:[%s7 + $0x28] sm:$0x1] %v223
    %241 = vst [vmem:[%s7 + $0x40] sm:$0xff] %v227
    %242 = vst [vmem:[%s7 + $0x48] sm:$0xff] %v229
    %243 = vst [vmem:[%s7 + $0x50] sm:$0x1] %v233
    %244 = vst [vmem:[%s7 + $0x58] sm:$0x1] %v235
    %v245 = vld [vmem:[#allocation4] sm:$0x3]
    %v246 = vld [vmem:[#allocation7] sm:$0xff]
    %v247 = vld [vmem:[#allocation7 + $0x8] sm:$0xff]
    %v248 = vld [vmem:[#allocation7 + $0x10] sm:$0xff]
    %v249 = vld [vmem:[#allocation7 + $0x18] sm:$0xff]
    %v250 = vld [vmem:[#allocation7 + $0x20] sm:$0xff]
    %v251 = vld [vmem:[#allocation7 + $0x28] sm:$0xff]
    %v252 = vld [vmem:[#allocation7 + $0x30] sm:$0xff]
    %v253 = vld [vmem:[#allocation7 + $0x38] sm:$0xff]
    %v254 = vld [vmem:[#allocation7 + $0x40] sm:$0xff]
    %v255 = vld [vmem:[#allocation7 + $0x48] sm:$0xff]
    %v256 = vld [vmem:[#allocation7 + $0x50] sm:$0xff]
    %v257 = vld [vmem:[#allocation7 + $0x58] sm:$0xff]
    %v258 = vld [vmem:[#allocation7 + $0x60] sm:$0xff]
    %v259 = vld [vmem:[#allocation7 + $0x68] sm:$0xff]
    %v260 = vld [vmem:[#allocation7 + $0x70] sm:$0xff]
    %v261 = vld [vmem:[#allocation7 + $0x78] sm:$0xff]
    %v262 = vld [vmem:[#allocation7 + $0x80] sm:$0xff]
    %v263 = vld [vmem:[#allocation7 + $0x88] sm:$0xff]
    %v264 = vld [vmem:[#allocation7 + $0x90] sm:$0xff]
    %v265 = vld [vmem:[#allocation7 + $0x98] sm:$0xff]
    %v266 = vld [vmem:[#allocation7 + $0xa0] sm:$0xff]
    %v267 = vld [vmem:[#allocation7 + $0xa8] sm:$0xff]
    %v268 = vld [vmem:[#allocation7 + $0xb0] sm:$0xff]
    %v269 = vld [vmem:[#allocation7 + $0xb8] sm:$0xff]
    %v270 = vld [vmem:[#allocation7 + $0xc0] sm:$0xff]
    %v271 = vld [vmem:[#allocation7 + $0xc8] sm:$0xff]
    %v272 = vld [vmem:[#allocation7 + $0xd0] sm:$0xff]
    %v273 = vld [vmem:[#allocation7 + $0xd8] sm:$0xff]
    %v274 = vld [vmem:[#allocation7 + $0xe0] sm:$0xff]
    %v275 = vld [vmem:[#allocation7 + $0xe8] sm:$0xff]
    %v276 = vld [vmem:[#allocation7 + $0xf0] sm:$0xff]
    %v277 = vld [vmem:[#allocation7 + $0xf8] sm:$0xff]
    %v278 = vld [vmem:[%s4] sm:$0x3]
    %v280 = vlaneseq
    %v281 = vshrl.u32 %v280, 7
    %v282 = vsub.s32 0, %v281
    %v283 = vrot.slane %v278, %v282
    %v284 = vlaneseq
    %v285 = vshrl.u32 %v284, 7
    %v286 = vsub.s32 1, %v285
    %v287 = vrot.slane %v278, %v286
    %290 = vmatprep.subr.mxu0 %v277
    %291 = vmatpush1.msra.mxu0 %v276
    %292 = vmatprep.subr.mxu0 %v275
    %293 = vmatpush1.msra.mxu0 %v274
    %294 = vmatprep.subr.mxu0 %v273
    %295 = vmatpush1.msra.mxu0 %v272
    %296 = vmatprep.subr.mxu0 %v271
    %297 = vmatpush1.msra.mxu0 %v270
    %298 = vmatprep.subr.mxu0 %v269
    %299 = vmatpush1.msra.mxu0 %v268
    %300 = vmatprep.subr.mxu0 %v267
    %301 = vmatpush1.msra.mxu0 %v266
    %302 = vmatprep.subr.mxu0 %v265
    %303 = vmatpush1.msra.mxu0 %v264
    %304 = vmatprep.subr.mxu0 %v263
    %305 = vmatpush1.msra.mxu0 %v262
    %306 = vmatprep.subr.mxu0 %v261
    %307 = vmatpush1.msra.mxu0 %v260
    %308 = vmatprep.subr.mxu0 %v259
    %309 = vmatpush1.msra.mxu0 %v258
    %310 = vmatprep.subr.mxu0 %v257
    %311 = vmatpush1.msra.mxu0 %v256
    %312 = vmatprep.subr.mxu0 %v255
    %313 = vmatpush1.msra.mxu0 %v254
    %314 = vmatprep.subr.mxu0 %v253
    %315 = vmatpush1.msra.mxu0 %v252
    %316 = vmatprep.subr.mxu0 %v251
    %317 = vmatpush1.msra.mxu0 %v250
    %318 = vmatprep.subr.mxu0 %v249
    %319 = vmatpush1.msra.mxu0 %v248
    %320 = vmatprep.subr.mxu0 %v247
    %321 = vmatpush1.msra.mxu0 %v246
    %322 = vmatprep.subr.mxu0 0.0
    %323 = vmatpush2.msra.mxu0 0.0
    %324 = vmatprep.subr.mxu0 0.0
    %325 = vmatpush2.msra.mxu0 0.0
    %326 = vmatprep.subr.mxu0 0.0
    %327 = vmatpush2.msra.mxu0 0.0
    %328 = vmatprep.subr.mxu0 0.0
    %329 = vmatpush2.msra.mxu0 0.0
    %330 = vmatprep.subr.mxu0 0.0
    %331 = vmatpush2.msra.mxu0 0.0
    %332 = vmatprep.subr.mxu0 0.0
    %333 = vmatpush2.msra.mxu0 0.0
    %334 = vmatprep.subr.mxu0 0.0
    %335 = vmatpush2.msra.mxu0 0.0
    %336 = vmatprep.subr.mxu0 0.0
    %337 = vmatpush2.msra.mxu0 0.0
    %338 = vmatprep.subr.mxu0 0.0
    %339 = vmatpush2.msra.mxu0 0.0
    %340 = vmatprep.subr.mxu0 0.0
    %341 = vmatpush2.msra.mxu0 0.0
    %342 = vmatprep.subr.mxu0 0.0
    %343 = vmatpush2.msra.mxu0 0.0
    %344 = vmatprep.subr.mxu0 0.0
    %345 = vmatpush2.msra.mxu0 0.0
    %346 = vmatprep.subr.mxu0 0.0
    %347 = vmatpush2.msra.mxu0 0.0
    %348 = vmatprep.subr.mxu0 0.0
    %349 = vmatpush2.msra.mxu0 0.0
    %350 = vmatprep.subr.mxu0 0.0
    %351 = vmatpush2.msra.mxu0 0.0
    %352 = vmatprep.subr.mxu0 0.0
    %353 = vmatpush2.msra.mxu0 0.0
    %354 = vmatprep.mubr.f32.mxu0 0.0
    %355 = vmatmul.mubr.f32.gmra.mxu0 %v245
    %v356 = vpop.f32.mrf.mxu0
    %v357 = vadd.f32 %v283, %v356
    %v358 = vpop.f32.mrf.mxu0
    %v359 = vadd.f32 %v287, %v358
    %360 = vdwg.mxu0
    %v363 = vcombine.low %v357, %v359
    %v365 = vunpack.c.l.s4 1966171168
    %v366 = vunpack.c.0.s8 %v365
    %v367 = vlaneseq
    %v368 = vshrl.u32 %v367, 7
    %v369 = vsub.s32 %v366, %v368
    %v370 = vrot.slane %v363, %v369
    %v372 = vunpack.c.l.s4 1966171168
    %v373 = vunpack.c.0.s8 %v372
    %v374 = vlaneseq
    %v375 = vshrl.u32 %v374, 7
    %v376 = vsub.s32 %v373, %v375
    %v377 = vrot.slane %v370, %v376
    %v379 = vlaneseq
    %vm380 = vcmp.ge.s32.totalorder %v379, 0
    %vm381 = vcmp.lt.s32.totalorder %v379, 256
    %vm382 = vmand %vm380, %vm381
    %s383 = scalar_lea.vmem %s7, 16
    %384 = vst.msk [vmem:[%s383] ss:$8 sm:$0x3] %vm382, %v377
    %385 = vst.msk [vmem:[%s383] ss:$8 sm:$0x0] %vm382, %v377
    %v386 = vcombine.high %v370, %v370
    %v388 = vunpack.c.l.s4 1966171168
    %v389 = vunpack.c.0.s8 %v388
    %v390 = vlaneseq
    %v391 = vshrl.u32 %v390, 7
    %v392 = vsub.s32 %v389, %v391
    %v393 = vrot.slane %v386, %v392
    %s395 = scalar_lea.vmem %s7, 48
    %s396 = scalar_lea.vmem %s395, 16
    %397 = vst.msk [vmem:[%s396] ss:$8 sm:$0x3] %vm382, %v393
    %398 = vst.msk [vmem:[%s396] ss:$8 sm:$0x0] %vm382, %v393
    // Predicated region
    $region50: #{tpu_custom_call.1} parent=1 // pred_check
      _
    $region51: #{tpu_custom_call.1} parent=1 // pred_check_branch
      %400 = sbr.rel (0) target = $region53
    $region52: #{tpu_custom_call.1} parent=1 // pred_region
      _
    $region53: #{tpu_custom_call.1} parent=1 // pred_fallthru
      _
    // Predicated region
    $region54: #{tpu_custom_call.1} parent=1 // pred_check
      _
    $region55: #{tpu_custom_call.1} parent=1 // pred_check_branch
      %402 = sbr.rel (0) target = $region57
    $region56: #{tpu_custom_call.1} parent=1 // pred_region
      _
    $region57: #{tpu_custom_call.1} parent=1 // pred_fallthru
      _
    %403 = vsyncpa [#allocation3], 1
    %404 = vsyncpa [#allocation5], 1
    %405 = vsyncpa [#allocation8], 1

// kernel: tpu_custom_call.1
$region0: #{tpu_custom_call.1}
  #allocation0 [shape = 'u32[]', space=smem, size = 0x4, offset = 0x4, fixed_abs, tag = 'smem constant byte address 0x4 - core index']
  #allocation1 [shape = 'u32[144,128]{1,0:T(1,128)}', space=vmem, size = 0x12000, scoped, tag = 'internal scratch']
  %s0 = inlined_call_operand.hbm [shape: f32[2,8,256], index: 0, kind: input, shape index: {}]
  %s1 = inlined_call_operand.hbm [shape: f32[2,128], index: 1, kind: input, shape index: {}]
  %s2 = inlined_call_operand.hbm [shape: f32[2,16,128], index: 2, kind: input, shape index: {}]
  %s3 = inlined_call_operand.hbm [shape: f32[128,256], index: 3, kind: input, shape index: {}]
  %s4 = inlined_call_operand.vmem [shape: f32[1,256], index: 4, kind: input, shape index: {}]
  %s5 = inlined_call_operand.hbm [shape: f32[128,256], index: 5, kind: input, shape index: {}]
  %s6 = inlined_call_operand.vmem [shape: f32[1,256], index: 6, kind: input, shape index: {}]
  %s7 = inlined_call_operand.vmem [shape: f32[2,17,256], index: 7, kind: output, shape index: {}]
  %s8 = sld [smem:[#allocation0]]
  $region58: #{tpu_custom_call.1} parent=0
    _
  %s10 = ssub.s32 1, %s8
  %s11 = scalar_select 0, %s10, %s8
  $region1: #{tpu_custom_call.1} parent=0
    #allocation2 [shape = 'u8[16384]{0}', space=vmem, size = 0x4000, scoped, tag = 'input window, operand 0, single buffered']
    #allocation3 [shape = 's32[1]{0}', space=sflag, size = 0x4, scoped, tag = 'scoped memory for tpu_custom_call.1']
    #allocation4 [shape = 'u8[1024]{0}', space=vmem, size = 0x400, scoped, tag = 'input window, operand 1, single buffered']
    #allocation5 [shape = 's32[1]{0}', space=sflag, size = 0x4, scoped, tag = 'scoped memory for tpu_custom_call.1']
    #allocation6 [shape = 'u8[16384]{0}', space=vmem, size = 0x4000, scoped, tag = 'input window, operand 2, single buffered']
    #allocation7 [shape = 'u8[131072]{0}', space=vmem, size = 0x20000, scoped, tag = 'input window, operand 3, single buffered']
    #allocation8 [shape = 's32[1]{0}', space=sflag, size = 0x4, scoped, tag = 'scoped memory for tpu_custom_call.1']
    #allocation9 [shape = 'u8[131072]{0}', space=vmem, size = 0x20000, scoped, tag = 'input window, operand 5, single buffered']
    %12 = vsyncpa [#allocation3], 0
    %13 = vsyncpa [#allocation5], 0
    %14 = vsyncpa [#allocation8], 0
    // Predicated region
    $region2: #{tpu_custom_call.1} parent=1 // pred_check
      _
    $region3: #{tpu_custom_call.1} parent=1 // pred_check_branch
      %16 = sbr.rel (0) target = $region5
    $region4: #{tpu_custom_call.1} parent=1 // pred_region
      %s18 = ssub.s32 512, 512
      %19 = vsyncadd [#allocation3], %s18
      %s20 = sshll.u32 [#allocation2], 4
      %s21 = int_to_ptr.vmem [resolvable:$true] %s20
      %26 = dma.hbm_to_vmem [thread:$0]  %s0, 512, %s21, [#allocation3], 256, 256, 16
    $region5: #{tpu_custom_call.1} parent=1 // pred_fallthru
      _
    // Predicated region
    $region6: #{tpu_custom_call.1} parent=1 // pred_check
      _
    $region7: #{tpu_custom_call.1} parent=1 // pred_check_branch
      %28 = sbr.rel (0) target = $region9
    $region8: #{tpu_custom_call.1} parent=1 // pred_region
      %s30 = ssub.s32 32, 32
      %31 = vsyncadd [#allocation5], %s30
      %s33 = sshll.u32 [#allocation4], 4
      %s34 = int_to_ptr.vmem [resolvable:$true] %s33
      %36 = dma.hbm_to_vmem [thread:$0]  %s1, 32, %s34, [#allocation5]
    $region9: #{tpu_custom_call.1} parent=1 // pred_fallthru
      _
    // Predicated region
    $region10: #{tpu_custom_call.1} parent=1 // pred_check
      _
    $region11: #{tpu_custom_call.1} parent=1 // pred_check_branch
      %38 = sbr.rel (0) target = $region13
    $region12: #{tpu_custom_call.1} parent=1 // pred_region
      %s40 = ssub.s32 512, 512
      %41 = vsyncadd [#allocation5], %s40
      %s42 = sshll.u32 [#allocation6], 4
      %s43 = int_to_ptr.vmem [resolvable:$true] %s42
      %48 = dma.hbm_to_vmem [thread:$0]  %s2, 512, %s43, [#allocation5], 128, 128, 8
    $region13: #{tpu_custom_call.1} parent=1 // pred_fallthru
      _
    // Predicated region
    $region14: #{tpu_custom_call.1} parent=1 // pred_check
      _
    $region15: #{tpu_custom_call.1} parent=1 // pred_check_branch
      %50 = sbr.rel (0) target = $region17
    $region16: #{tpu_custom_call.1} parent=1 // pred_region
      %s52 = ssub.s32 4096, 4096
      %53 = vsyncadd [#allocation8], %s52
      %s54 = sshll.u32 [#allocation7], 4
      %s55 = int_to_ptr.vmem [resolvable:$true] %s54
      %60 = dma.hbm_to_vmem [thread:$0]  %s3, 4096, %s55, [#allocation8], 256, 256, 16
    $region17: #{tpu_custom_call.1} parent=1 // pred_fallthru
      _
    // Predicated region
    $region18: #{tpu_custom_call.1} parent=1 // pred_check
      _
    $region19: #{tpu_custom_call.1} parent=1 // pred_check_branch
      %62 = sbr.rel (0) target = $region21
    $region20: #{tpu_custom_call.1} parent=1 // pred_region
      _
    $region21: #{tpu_custom_call.1} parent=1 // pred_fallthru
      _
    // Predicated region
    $region22: #{tpu_custom_call.1} parent=1 // pred_check
      _
    $region23: #{tpu_custom_call.1} parent=1 // pred_check_branch
      %64 = sbr.rel (0) target = $region25
    $region24: #{tpu_custom_call.1} parent=1 // pred_region
      %s66 = ssub.s32 4096, 4096
      %67 = vsyncadd [#allocation8], %s66
      %s68 = sshll.u32 [#allocation9], 4
      %s69 = int_to_ptr.vmem [resolvable:$true] %s68
      %74 = dma.hbm_to_vmem [thread:$0]  %s5, 4096, %s69, [#allocation8], 256, 256, 16
    $region25: #{tpu_custom_call.1} parent=1 // pred_fallthru
      _
    // Predicated region
    $region26: #{tpu_custom_call.1} parent=1 // pred_check
      _
    $region27: #{tpu_custom_call.1} parent=1 // pred_check_branch
      %76 = sbr.rel (0) target = $region29
    $region28: #{tpu_custom_call.1} parent=1 // pred_region
      _
    $region29: #{tpu_custom_call.1} parent=1 // pred_fallthru
      _
    // Predicated region
    $region30: #{tpu_custom_call.1} parent=1 // pred_check
      _
    $region31: #{tpu_custom_call.1} parent=1 // pred_check_branch
      %78 = sbr.rel (0) target = $region33
    $region32: #{tpu_custom_call.1} parent=1 // pred_region
      %79 = dma.done [#allocation3], 512
    $region33: #{tpu_custom_call.1} parent=1 // pred_fallthru
      _
    // Predicated region
    $region34: #{tpu_custom_call.1} parent=1 // pred_check
      _
    $region35: #{tpu_custom_call.1} parent=1 // pred_check_branch
      %81 = sbr.rel (0) target = $region37
    $region36: #{tpu_custom_call.1} parent=1 // pred_region
      %82 = dma.done [#allocation5], 32
    $region37: #{tpu_custom_call.1} parent=1 // pred_fallthru
      _
    // Predicated region
    $region38: #{tpu_custom_call.1} parent=1 // pred_check
      _
    $region39: #{tpu_custom_call.1} parent=1 // pred_check_branch
      %84 = sbr.rel (0) target = $region41
    $region40: #{tpu_custom_call.1} parent=1 // pred_region
      %85 = dma.done [#allocation5], 512
    $region41: #{tpu_custom_call.1} parent=1 // pred_fallthru
      _
    // Predicated region
    $region42: #{tpu_custom_call.1} parent=1 // pred_check
      _
    $region43: #{tpu_custom_call.1} parent=1 // pred_check_branch
      %87 = sbr.rel (0) target = $region45
    $region44: #{tpu_custom_call.1} parent=1 // pred_region
      %88 = dma.done [#allocation8], 4096
    $region45: #{tpu_custom_call.1} parent=1 // pred_fallthru
      _
    // Predicated region
    $region46: #{tpu_custom_call.1} parent=1 // pred_check
      _
    $region47: #{tpu_custom_call.1} parent=1 // pred_check_branch
      %90 = sbr.rel (0) target = $region49
    $region48: #{tpu_custom_call.1} parent=1 // pred_region
      %91 = dma.done [#allocation8], 4096
    $region49: #{tpu_custom_call.1} parent=1 // pred_fallthru
      _
    %v92 = vld [vmem:[#allocation2] sm:$0xff]
    %v93 = vld [vmem:[#allocation2 + $0x8] sm:$0xff]
    %v94 = vld [vmem:[#allocation2 + $0x10] sm:$0xff]
    %v95 = vld [vmem:[#allocation2 + $0x18] sm:$0xff]
    %96 = vst [vmem:[%s7] sm:$0xff] %v92
    %97 = vst [vmem:[%s7 + $0x8] sm:$0xff] %v93
    %98 = vst [vmem:[%s7 + $0x30] sm:$0xff] %v94
    %99 = vst [vmem:[%s7 + $0x38] sm:$0xff] %v95
    %v100 = vld [vmem:[#allocation6] sm:$0xff]
    %v101 = vld [vmem:[#allocation6 + $0x8] sm:$0xff]
    %v102 = vld [vmem:[#allocation6 + $0x10] sm:$0xff]
    %v103 = vld [vmem:[#allocation6 + $0x18] sm:$0xff]
    %v104 = vld [vmem:[#allocation9] sm:$0xff]
    %v105 = vld [vmem:[#allocation9 + $0x8] sm:$0xff]
    %v106 = vld [vmem:[#allocation9 + $0x10] sm:$0xff]
    %v107 = vld [vmem:[#allocation9 + $0x18] sm:$0xff]
    %v108 = vld [vmem:[#allocation9 + $0x20] sm:$0xff]
    %v109 = vld [vmem:[#allocation9 + $0x28] sm:$0xff]
    %v110 = vld [vmem:[#allocation9 + $0x30] sm:$0xff]
    %v111 = vld [vmem:[#allocation9 + $0x38] sm:$0xff]
    %v112 = vld [vmem:[#allocation9 + $0x40] sm:$0xff]
    %v113 = vld [vmem:[#allocation9 + $0x48] sm:$0xff]
    %v114 = vld [vmem:[#allocation9 + $0x50] sm:$0xff]
    %v115 = vld [vmem:[#allocation9 + $0x58] sm:$0xff]
    %v116 = vld [vmem:[#allocation9 + $0x60] sm:$0xff]
    %v117 = vld [vmem:[#allocation9 + $0x68] sm:$0xff]
    %v118 = vld [vmem:[#allocation9 + $0x70] sm:$0xff]
    %v119 = vld [vmem:[#allocation9 + $0x78] sm:$0xff]
    %v120 = vld [vmem:[#allocation9 + $0x80] sm:$0xff]
    %v121 = vld [vmem:[#allocation9 + $0x88] sm:$0xff]
    %v122 = vld [vmem:[#allocation9 + $0x90] sm:$0xff]
    %v123 = vld [vmem:[#allocation9 + $0x98] sm:$0xff]
    %v124 = vld [vmem:[#allocation9 + $0xa0] sm:$0xff]
    %v125 = vld [vmem:[#allocation9 + $0xa8] sm:$0xff]
    %v126 = vld [vmem:[#allocation9 + $0xb0] sm:$0xff]
    %v127 = vld [vmem:[#allocation9 + $0xb8] sm:$0xff]
    %v128 = vld [vmem:[#allocation9 + $0xc0] sm:$0xff]
    %v129 = vld [vmem:[#allocation9 + $0xc8] sm:$0xff]
    %v130 = vld [vmem:[#allocation9 + $0xd0] sm:$0xff]
    %v131 = vld [vmem:[#allocation9 + $0xd8] sm:$0xff]
    %v132 = vld [vmem:[#allocation9 + $0xe0] sm:$0xff]
    %v133 = vld [vmem:[#allocation9 + $0xe8] sm:$0xff]
    %v134 = vld [vmem:[#allocation9 + $0xf0] sm:$0xff]
    %v135 = vld [vmem:[#allocation9 + $0xf8] sm:$0xff]
    %v136 = vld [vmem:[%s6] sm:$0x3]
    %v138 = vlaneseq
    %v139 = vshrl.u32 %v138, 7
    %v140 = vsub.s32 0, %v139
    %v141 = vrot.slane %v136, %v140
    %v142 = vlaneseq
    %v143 = vshrl.u32 %v142, 7
    %v144 = vsub.s32 1, %v143
    %v145 = vrot.slane %v136, %v144
    %148 = vmatprep.subr.mxu0 %v135
    %149 = vmatpush1.msra.mxu0 %v134
    %150 = vmatprep.subr.mxu0 %v133
    %151 = vmatpush1.msra.mxu0 %v132
    %152 = vmatprep.subr.mxu0 %v131
    %153 = vmatpush1.msra.mxu0 %v130
    %154 = vmatprep.subr.mxu0 %v129
    %155 = vmatpush1.msra.mxu0 %v128
    %156 = vmatprep.subr.mxu0 %v127
    %157 = vmatpush1.msra.mxu0 %v126
    %158 = vmatprep.subr.mxu0 %v125
    %159 = vmatpush1.msra.mxu0 %v124
    %160 = vmatprep.subr.mxu0 %v123
    %161 = vmatpush1.msra.mxu0 %v122
    %162 = vmatprep.subr.mxu0 %v121
    %163 = vmatpush1.msra.mxu0 %v120
    %164 = vmatprep.subr.mxu0 %v119
    %165 = vmatpush1.msra.mxu0 %v118
    %166 = vmatprep.subr.mxu0 %v117
    %167 = vmatpush1.msra.mxu0 %v116
    %168 = vmatprep.subr.mxu0 %v115
    %169 = vmatpush1.msra.mxu0 %v114
    %170 = vmatprep.subr.mxu0 %v113
    %171 = vmatpush1.msra.mxu0 %v112
    %172 = vmatprep.subr.mxu0 %v111
    %173 = vmatpush1.msra.mxu0 %v110
    %174 = vmatprep.subr.mxu0 %v109
    %175 = vmatpush1.msra.mxu0 %v108
    %176 = vmatprep.subr.mxu0 %v107
    %177 = vmatpush1.msra.mxu0 %v106
    %178 = vmatprep.subr.mxu0 %v105
    %179 = vmatpush1.msra.mxu0 %v104
    %180 = vmatprep.subr.mxu0 0.0
    %181 = vmatpush2.msra.mxu0 0.0
    %182 = vmatprep.subr.mxu0 0.0
    %183 = vmatpush2.msra.mxu0 0.0
    %184 = vmatprep.subr.mxu0 0.0
    %185 = vmatpush2.msra.mxu0 0.0
    %186 = vmatprep.subr.mxu0 0.0
    %187 = vmatpush2.msra.mxu0 0.0
    %188 = vmatprep.subr.mxu0 0.0
    %189 = vmatpush2.msra.mxu0 0.0
    %190 = vmatprep.subr.mxu0 0.0
    %191 = vmatpush2.msra.mxu0 0.0
    %192 = vmatprep.subr.mxu0 0.0
    %193 = vmatpush2.msra.mxu0 0.0
    %194 = vmatprep.subr.mxu0 0.0
    %195 = vmatpush2.msra.mxu0 0.0
    %196 = vmatprep.subr.mxu0 0.0
    %197 = vmatpush2.msra.mxu0 0.0
    %198 = vmatprep.subr.mxu0 0.0
    %199 = vmatpush2.msra.mxu0 0.0
    %200 = vmatprep.subr.mxu0 0.0
    %201 = vmatpush2.msra.mxu0 0.0
    %202 = vmatprep.subr.mxu0 0.0
    %203 = vmatpush2.msra.mxu0 0.0
    %204 = vmatprep.subr.mxu0 0.0
    %205 = vmatpush2.msra.mxu0 0.0
    %206 = vmatprep.subr.mxu0 0.0
    %207 = vmatpush2.msra.mxu0 0.0
    %208 = vmatprep.subr.mxu0 0.0
    %209 = vmatpush2.msra.mxu0 0.0
    %210 = vmatprep.subr.mxu0 0.0
    %211 = vmatpush2.msra.mxu0 0.0
    %212 = vmatprep.mubr.f32.mxu0 0.0
    %213 = vmatmul.mubr.f32.gmra.mxu0 %v100
    %v214 = vpop.f32.mrf.mxu0
    %v215 = vadd.f32 %v141, %v214
    %v216 = vpop.f32.mrf.mxu0
    %v217 = vadd.f32 %v145, %v216
    %218 = vmatprep.mubr.f32.mxu0 0.0
    %219 = vmatmul.mubr.f32.gmra.mxu0 %v101
    %v220 = vpop.f32.mrf.mxu0
    %v221 = vadd.f32 %v141, %v220
    %v222 = vpop.f32.mrf.mxu0
    %v223 = vadd.f32 %v145, %v222
    %224 = vmatprep.mubr.f32.mxu0 0.0
    %225 = vmatmul.mubr.f32.gmra.mxu0 %v102
    %v226 = vpop.f32.mrf.mxu0
    %v227 = vadd.f32 %v141, %v226
    %v228 = vpop.f32.mrf.mxu0
    %v229 = vadd.f32 %v145, %v228
    %230 = vmatprep.mubr.f32.mxu0 0.0
    %231 = vmatmul.mubr.f32.gmra.mxu0 %v103
    %v232 = vpop.f32.mrf.mxu0
    %v233 = vadd.f32 %v141, %v232
    %v234 = vpop.f32.mrf.mxu0
    %v235 = vadd.f32 %v145, %v234
    %236 = vdwg.mxu0
    %237 = vst [vmem:[%s7 + $0x10] sm:$0xff] %v215
    %238 = vst [vmem:[%s7 + $0x18] sm:$0xff] %v217
    %239 = vst [vmem:[%s7 + $0x20] sm:$0x1] %v221
    %240 = vst [vmem:[%s7 + $0x28] sm:$0x1] %v223
    %241 = vst [vmem:[%s7 + $0x40] sm:$0xff] %v227
    %242 = vst [vmem:[%s7 + $0x48] sm:$0xff] %v229
    %243 = vst [vmem:[%s7 + $0x50] sm:$0x1] %v233
    %244 = vst [vmem:[%s7 + $0x58] sm:$0x1] %v235
    %v245 = vld [vmem:[#allocation4] sm:$0x3]
    %v246 = vld [vmem:[#allocation7] sm:$0xff]
    %v247 = vld [vmem:[#allocation7 + $0x8] sm:$0xff]
    %v248 = vld [vmem:[#allocation7 + $0x10] sm:$0xff]
    %v249 = vld [vmem:[#allocation7 + $0x18] sm:$0xff]
    %v250 = vld [vmem:[#allocation7 + $0x20] sm:$0xff]
    %v251 = vld [vmem:[#allocation7 + $0x28] sm:$0xff]
    %v252 = vld [vmem:[#allocation7 + $0x30] sm:$0xff]
    %v253 = vld [vmem:[#allocation7 + $0x38] sm:$0xff]
    %v254 = vld [vmem:[#allocation7 + $0x40] sm:$0xff]
    %v255 = vld [vmem:[#allocation7 + $0x48] sm:$0xff]
    %v256 = vld [vmem:[#allocation7 + $0x50] sm:$0xff]
    %v257 = vld [vmem:[#allocation7 + $0x58] sm:$0xff]
    %v258 = vld [vmem:[#allocation7 + $0x60] sm:$0xff]
    %v259 = vld [vmem:[#allocation7 + $0x68] sm:$0xff]
    %v260 = vld [vmem:[#allocation7 + $0x70] sm:$0xff]
    %v261 = vld [vmem:[#allocation7 + $0x78] sm:$0xff]
    %v262 = vld [vmem:[#allocation7 + $0x80] sm:$0xff]
    %v263 = vld [vmem:[#allocation7 + $0x88] sm:$0xff]
    %v264 = vld [vmem:[#allocation7 + $0x90] sm:$0xff]
    %v265 = vld [vmem:[#allocation7 + $0x98] sm:$0xff]
    %v266 = vld [vmem:[#allocation7 + $0xa0] sm:$0xff]
    %v267 = vld [vmem:[#allocation7 + $0xa8] sm:$0xff]
    %v268 = vld [vmem:[#allocation7 + $0xb0] sm:$0xff]
    %v269 = vld [vmem:[#allocation7 + $0xb8] sm:$0xff]
    %v270 = vld [vmem:[#allocation7 + $0xc0] sm:$0xff]
    %v271 = vld [vmem:[#allocation7 + $0xc8] sm:$0xff]
    %v272 = vld [vmem:[#allocation7 + $0xd0] sm:$0xff]
    %v273 = vld [vmem:[#allocation7 + $0xd8] sm:$0xff]
    %v274 = vld [vmem:[#allocation7 + $0xe0] sm:$0xff]
    %v275 = vld [vmem:[#allocation7 + $0xe8] sm:$0xff]
    %v276 = vld [vmem:[#allocation7 + $0xf0] sm:$0xff]
    %v277 = vld [vmem:[#allocation7 + $0xf8] sm:$0xff]
    %v278 = vld [vmem:[%s4] sm:$0x3]
    %v280 = vlaneseq
    %v281 = vshrl.u32 %v280, 7
    %v282 = vsub.s32 0, %v281
    %v283 = vrot.slane %v278, %v282
    %v284 = vlaneseq
    %v285 = vshrl.u32 %v284, 7
    %v286 = vsub.s32 1, %v285
    %v287 = vrot.slane %v278, %v286
    %290 = vmatprep.subr.mxu0 %v277
    %291 = vmatpush1.msra.mxu0 %v276
    %292 = vmatprep.subr.mxu0 %v275
    %293 = vmatpush1.msra.mxu0 %v274
    %294 = vmatprep.subr.mxu0 %v273
    %295 = vmatpush1.msra.mxu0 %v272
    %296 = vmatprep.subr.mxu0 %v271
    %297 = vmatpush1.msra.mxu0 %v270
    %298 = vmatprep.subr.mxu0 %v269
    %299 = vmatpush1.msra.mxu0 %v268
    %300 = vmatprep.subr.mxu0 %v267
    %301 = vmatpush1.msra.mxu0 %v266
    %302 = vmatprep.subr.mxu0 %v265
    %303 = vmatpush1.msra.mxu0 %v264
    %304 = vmatprep.subr.mxu0 %v263
    %305 = vmatpush1.msra.mxu0 %v262
    %306 = vmatprep.subr.mxu0 %v261
    %307 = vmatpush1.msra.mxu0 %v260
    %308 = vmatprep.subr.mxu0 %v259
    %309 = vmatpush1.msra.mxu0 %v258
    %310 = vmatprep.subr.mxu0 %v257
    %311 = vmatpush1.msra.mxu0 %v256
    %312 = vmatprep.subr.mxu0 %v255
    %313 = vmatpush1.msra.mxu0 %v254
    %314 = vmatprep.subr.mxu0 %v253
    %315 = vmatpush1.msra.mxu0 %v252
    %316 = vmatprep.subr.mxu0 %v251
    %317 = vmatpush1.msra.mxu0 %v250
    %318 = vmatprep.subr.mxu0 %v249
    %319 = vmatpush1.msra.mxu0 %v248
    %320 = vmatprep.subr.mxu0 %v247
    %321 = vmatpush1.msra.mxu0 %v246
    %322 = vmatprep.subr.mxu0 0.0
    %323 = vmatpush2.msra.mxu0 0.0
    %324 = vmatprep.subr.mxu0 0.0
    %325 = vmatpush2.msra.mxu0 0.0
    %326 = vmatprep.subr.mxu0 0.0
    %327 = vmatpush2.msra.mxu0 0.0
    %328 = vmatprep.subr.mxu0 0.0
    %329 = vmatpush2.msra.mxu0 0.0
    %330 = vmatprep.subr.mxu0 0.0
    %331 = vmatpush2.msra.mxu0 0.0
    %332 = vmatprep.subr.mxu0 0.0
    %333 = vmatpush2.msra.mxu0 0.0
    %334 = vmatprep.subr.mxu0 0.0
    %335 = vmatpush2.msra.mxu0 0.0
    %336 = vmatprep.subr.mxu0 0.0
    %337 = vmatpush2.msra.mxu0 0.0
    %338 = vmatprep.subr.mxu0 0.0
    %339 = vmatpush2.msra.mxu0 0.0
    %340 = vmatprep.subr.mxu0 0.0
    %341 = vmatpush2.msra.mxu0 0.0
    %342 = vmatprep.subr.mxu0 0.0
    %343 = vmatpush2.msra.mxu0 0.0
    %344 = vmatprep.subr.mxu0 0.0
    %345 = vmatpush2.msra.mxu0 0.0
    %346 = vmatprep.subr.mxu0 0.0
    %347 = vmatpush2.msra.mxu0 0.0
    %348 = vmatprep.subr.mxu0 0.0
    %349 = vmatpush2.msra.mxu0 0.0
    %350 = vmatprep.subr.mxu0 0.0
    %351 = vmatpush2.msra.mxu0 0.0
    %352 = vmatprep.subr.mxu0 0.0
    %353 = vmatpush2.msra.mxu0 0.0
    %354 = vmatprep.mubr.f32.mxu0 0.0
    %355 = vmatmul.mubr.f32.gmra.mxu0 %v245
    %v356 = vpop.f32.mrf.mxu0
    %v357 = vadd.f32 %v283, %v356
    %v358 = vpop.f32.mrf.mxu0
    %v359 = vadd.f32 %v287, %v358
    %360 = vdwg.mxu0
    %v363 = vcombine.low %v357, %v359
    %v365 = vunpack.c.l.s4 1966171168
    %v366 = vunpack.c.0.s8 %v365
    %v367 = vlaneseq
    %v368 = vshrl.u32 %v367, 7
    %v369 = vsub.s32 %v366, %v368
    %v370 = vrot.slane %v363, %v369
    %v372 = vunpack.c.l.s4 1966171168
    %v373 = vunpack.c.0.s8 %v372
    %v374 = vlaneseq
    %v375 = vshrl.u32 %v374, 7
    %v376 = vsub.s32 %v373, %v375
    %v377 = vrot.slane %v370, %v376
    %v379 = vlaneseq
    %vm380 = vcmp.ge.s32.totalorder %v379, 0
    %vm381 = vcmp.lt.s32.totalorder %v379, 256
    %vm382 = vmand %vm380, %vm381
    %s383 = scalar_lea.vmem %s7, 16
    %384 = vst.msk [vmem:[%s383] ss:$8 sm:$0x3] %vm382, %v377
    %385 = vst.msk [vmem:[%s383] ss:$8 sm:$0x0] %vm382, %v377
    %v386 = vcombine.high %v370, %v370
    %v388 = vunpack.c.l.s4 1966171168
    %v389 = vunpack.c.0.s8 %v388
    %v390 = vlaneseq
    %v391 = vshrl.u32 %v390, 7
    %v392 = vsub.s32 %v389, %v391
    %v393 = vrot.slane %v386, %v392
    %s395 = scalar_lea.vmem %s7, 48
    %s396 = scalar_lea.vmem %s395, 16
    %397 = vst.msk [vmem:[%s396] ss:$8 sm:$0x3] %vm382, %v393
    %398 = vst.msk [vmem:[%s396] ss:$8 sm:$0x0] %vm382, %v393
    // Predicated region
    $region50: #{tpu_custom_call.1} parent=1 // pred_check
      _
    $region51: #{tpu_custom_call.1} parent=1 // pred_check_branch
      %400 = sbr.rel (0) target = $region53
    $region52: #{tpu_custom_call.1} parent=1 // pred_region
      _
    $region53: #{tpu_custom_call.1} parent=1 // pred_fallthru
      _
    // Predicated region
    $region54: #{tpu_custom_call.1} parent=1 // pred_check
      _
    $region55: #{tpu_custom_call.1} parent=1 // pred_check_branch
      %402 = sbr.rel (0) target = $region57
    $region56: #{tpu_custom_call.1} parent=1 // pred_region
      _
    $region57: #{tpu_custom_call.1} parent=1 // pred_fallthru
      _
    %403 = vsyncpa [#allocation3], 1
    %404 = vsyncpa [#allocation5], 1
    %405 = vsyncpa [#allocation8], 1

</llo_original>
